<compile_context>
chip_gen: v5e
topology: v5e:2x2
jax: 0.10.0
libtpu: 0.0.40
codegen_flags: <defaults>
</compile_context>

<pallas_src>
import functools
import math

import jax
import jax.numpy as jnp
from jax.experimental import pallas as pl
from jax.experimental.pallas import tpu as pltpu


# --------------------------- hardware-aware sizing ---------------------------


def _round_up(x, m):
    return ((x + m - 1) // m) * m


@functools.lru_cache(maxsize=1)
def _vmem_capacity_bytes():
    try:
        info = pltpu.get_tpu_info()
        for name in ("vmem_capacity_bytes", "vmem_size_bytes", "vmem_bytes"):
            cap = getattr(info, name, None)
            if cap:
                return int(cap)
    except Exception:
        pass
    return 64 * 1024 * 1024  # conservative fallback (v7x per-TC VMEM)


@functools.lru_cache(maxsize=1)
def _budgets():
    """Returns (vmem_budget_bytes, node_tile_target, k_tile_target)."""
    cap = _vmem_capacity_bytes()
    if cap >= 100 * 1024 * 1024:            # v5e / v6e: 128 MiB physical VMEM
        return 96 * 1024 * 1024, 1024, 1024
    return 48 * 1024 * 1024, 512, 512       # v7x: 64 MiB per TensorCore


def _vmem_limit(estimate_bytes, budget):
    return int(min(budget, max(estimate_bytes + 8 * 1024 * 1024,
                               32 * 1024 * 1024)))


def _choose_node_tile(n, target):
    """Largest power-of-two multiple-of-128 tile <= target whose row padding
    stays modest; prefer >= 2 row tiles (v7x megacore) when that is free."""
    base = _round_up(n, 128)
    tile, n_p = 128, base
    t = 256
    while t <= target:
        cand = _round_up(n, t)
        if cand <= base * 1.3:   # accept <=30% extra rows for a bigger tile
            tile, n_p = t, cand
        t *= 2
    if n_p // tile < 2 and tile > 128:
        half = tile // 2
        if _round_up(n, half) == n_p:      # halving costs no extra padding
            tile = half
    return tile, n_p


def _divisor_tiles_desc(dim_p):
    return [t for t in range(dim_p, 0, -128) if dim_p % t == 0]


def _choose_k_tile(fin_p, fout_p, w_itemsize, target, budget):
    """Contraction tile for x @ W.  Prefer tile_k == fin_p so each W_s is
    streamed once per support instead of once per (row tile, k tile)."""
    w_block_budget = budget // 3            # leave room for x / pre / scratch
    if 2 * fin_p * fout_p * w_itemsize <= w_block_budget:
        return fin_p
    for t in _divisor_tiles_desc(fin_p):
        if t <= target and 2 * t * fout_p * w_itemsize <= w_block_budget:
            return t
    return 128


def _prep(a, rows, cols, dtype):
    """Single cast (if needed) + single pad (if needed); no-op otherwise."""
    if a.dtype != dtype:
        a = a.astype(dtype)
    pr, pc = rows - a.shape[-2], cols - a.shape[-1]
    if pr or pc:
        pad = [(0, 0)] * (a.ndim - 2) + [(0, pr), (0, pc)]
        a = jnp.pad(a, pad)
    return a


# ----------------------------------- kernels ---------------------------------


def _presup_kernel(x_ref, w_ref, pre_ref, acc_ref):
    """pre_sup[s] = x @ W_s; f32 accumulation, cast to pre dtype on last k."""
    k = pl.program_id(2)

    @pl.when(k == 0)
    def _():
        acc_ref[...] = jnp.zeros_like(acc_ref)

    acc_ref[...] += jnp.dot(x_ref[...], w_ref[...],
                            preferred_element_type=jnp.float32)

    @pl.when(k == pl.num_programs(2) - 1)
    def _():
        pre_ref[...] = acc_ref[...].astype(pre_ref.dtype)


def _agg_kernel(sup_ref, pre_ref, out_ref, acc_ref):
    """out = relu(sum_s support[s] @ pre_sup[s]); f32 scratch accumulation,
    relu + cast to out dtype written on the final (s, k) step only."""
    s, k = pl.program_id(1), pl.program_id(2)

    @pl.when(jnp.logical_and(s == 0, k == 0))
    def _():
        acc_ref[...] = jnp.zeros_like(acc_ref)

    acc_ref[...] += jnp.dot(sup_ref[...], pre_ref[...],
                            preferred_element_type=jnp.float32)

    @pl.when(jnp.logical_and(s == pl.num_programs(1) - 1,
                             k == pl.num_programs(2) - 1))
    def _():
        out_ref[...] = jnp.maximum(acc_ref[...], 0.0).astype(out_ref.dtype)


def _fused_kernel(sup_ref, x_ref, w_ref, out_ref, sx_ref, acc_ref):
    """out = relu(sum_s (support[s] @ x) @ W_s)  (used when fout > fin).

    NOTE: relies on the grid order (row tile, support, k) with k innermost and
    support second -- sx_ref / acc_ref accumulate across the two trailing
    "arbitrary" axes for a fixed row tile.  Do not reorder the grid.
    """
    s, k = pl.program_id(1), pl.program_id(2)
    nk = pl.num_programs(2)

    @pl.when(jnp.logical_and(s == 0, k == 0))
    def _():
        acc_ref[...] = jnp.zeros_like(acc_ref)

    @pl.when(k == 0)
    def _():
        sx_ref[...] = jnp.zeros_like(sx_ref)

    sx_ref[...] += jnp.dot(sup_ref[...], x_ref[...],
                           preferred_element_type=jnp.float32)

    @pl.when(k == nk - 1)
    def _():
        # Cast the (support @ x) tile to the MXU input dtype so the second
        # matmul also runs in bf16 mode when compute_dtype=bf16.
        acc_ref[...] += jnp.dot(sx_ref[...].astype(w_ref.dtype), w_ref[...],
                                preferred_element_type=jnp.float32)

    @pl.when(jnp.logical_and(s == pl.num_programs(1) - 1, k == nk - 1))
    def _():
        out_ref[...] = jnp.maximum(acc_ref[...], 0.0).astype(out_ref.dtype)


# ----------------------------- pallas_call wrappers ---------------------------


def _compute_presup(x_p, w_p, pre_dtype, *, tile_n, tile_k, vmem_limit):
    """pre_sup[s] = x @ W_s   -> [S, Np, Fout_p] in pre_dtype."""
    n_p, fin_p = x_p.shape
    s, _, fout_p = w_p.shape
    grid = (s, n_p // tile_n, fin_p // tile_k)

    x_bytes = x_p.size * x_p.dtype.itemsize
    w_bytes = w_p.size * w_p.dtype.itemsize
    pre_bytes = s * n_p * fout_p * jnp.dtype(pre_dtype).itemsize
    w_restream = 1 if tile_k == fin_p else (n_p // tile_n)
    cost = pl.CostEstimate(
        flops=2 * s * n_p * fin_p * fout_p,
        transcendentals=0,
        bytes_accessed=int(s * x_bytes + w_restream * w_bytes + pre_bytes),
    )
    return pl.pallas_call(
        _presup_kernel,
        out_shape=jax.ShapeDtypeStruct((s, n_p, fout_p), pre_dtype),
        grid_spec=pltpu.PrefetchScalarGridSpec(
            num_scalar_prefetch=0,
            grid=grid,
            in_specs=[
                pl.BlockSpec((tile_n, tile_k), lambda si, i, k: (i, k)),
                pl.BlockSpec((pl.Squeezed(), tile_k, fout_p),
                             lambda si, i, k: (si, k, 0)),
            ],
            out_specs=pl.BlockSpec((pl.Squeezed(), tile_n, fout_p),
                                   lambda si, i, k: (si, i, 0)),
            scratch_shapes=[pltpu.VMEM((tile_n, fout_p), jnp.float32)],
        ),
        compiler_params=pltpu.CompilerParams(
            dimension_semantics=("parallel", "parallel", "arbitrary"),
            vmem_limit_bytes=vmem_limit),
        cost_estimate=cost,
    )(x_p, w_p)


def _aggregate(sup_p, pre_p, out_dtype, *, tile, vmem_limit):
    """out = relu(sum_s support[s] @ pre_sup[s])."""
    s, n_p, _ = sup_p.shape
    fout_p = pre_p.shape[-1]
    grid = (n_p // tile, s, n_p // tile)
    cost = pl.CostEstimate(
        flops=2 * s * n_p * n_p * fout_p,
        transcendentals=0,
        bytes_accessed=int(sup_p.size * sup_p.dtype.itemsize
                           + (n_p // tile) * pre_p.size * pre_p.dtype.itemsize
                           + n_p * fout_p * jnp.dtype(out_dtype).itemsize),
    )
    return pl.pallas_call(
        _agg_kernel,
        out_shape=jax.ShapeDtypeStruct((n_p, fout_p), out_dtype),
        grid_spec=pltpu.PrefetchScalarGridSpec(
            num_scalar_prefetch=0,
            grid=grid,
            in_specs=[
                pl.BlockSpec((pl.Squeezed(), tile, tile),
                             lambda i, si, k: (si, i, k)),
                pl.BlockSpec((pl.Squeezed(), tile, fout_p),
                             lambda i, si, k: (si, k, 0)),
            ],
            out_specs=pl.BlockSpec((tile, fout_p), lambda i, si, k: (i, 0)),
            scratch_shapes=[pltpu.VMEM((tile, fout_p), jnp.float32)],
        ),
        compiler_params=pltpu.CompilerParams(
            dimension_semantics=("parallel", "arbitrary", "arbitrary"),
            vmem_limit_bytes=vmem_limit),
        cost_estimate=cost,
    )(sup_p, pre_p)


def _fused(sup_p, x_p, w_p, out_dtype, *, tile, vmem_limit):
    """out = relu(sum_s (support[s] @ x) @ W_s)."""
    s, n_p, _ = sup_p.shape
    fin_p = x_p.shape[-1]
    fout_p = w_p.shape[-1]
    grid = (n_p // tile, s, n_p // tile)
    rt = n_p // tile
    cost = pl.CostEstimate(
        flops=2 * s * (n_p * n_p * fin_p + n_p * fin_p * fout_p),
        transcendentals=0,
        bytes_accessed=int(sup_p.size * sup_p.dtype.itemsize
                           + rt * s * x_p.size * x_p.dtype.itemsize
                           + rt * w_p.size * w_p.dtype.itemsize
                           + n_p * fout_p * jnp.dtype(out_dtype).itemsize),
    )
    return pl.pallas_call(
        _fused_kernel,
        out_shape=jax.ShapeDtypeStruct((n_p, fout_p), out_dtype),
        grid_spec=pltpu.PrefetchScalarGridSpec(
            num_scalar_prefetch=0,
            grid=grid,
            in_specs=[
                pl.BlockSpec((pl.Squeezed(), tile, tile),
                             lambda i, si, k: (si, i, k)),
                pl.BlockSpec((tile, fin_p), lambda i, si, k: (k, 0)),
                pl.BlockSpec((pl.Squeezed(), fin_p, fout_p),
                             lambda i, si, k: (si, 0, 0)),
            ],
            out_specs=pl.BlockSpec((tile, fout_p), lambda i, si, k: (i, 0)),
            scratch_shapes=[pltpu.VMEM((tile, fin_p), jnp.float32),
                            pltpu.VMEM((tile, fout_p), jnp.float32)],
        ),
        compiler_params=pltpu.CompilerParams(
            dimension_semantics=("parallel", "arbitrary", "arbitrary"),
            vmem_limit_bytes=vmem_limit),
        cost_estimate=cost,
    )(sup_p, x_p, w_p)


# --------------------------------- public entry -------------------------------


def graph_convolution(x, supports, weights, *, compute_dtype=None):
    """
    Forward of GraphConvolution (act=ReLU, featureless=False, bias=False,
    dropout_rate=0.0 -> identity).

    x:        [N, input_dim]
    supports: [num_support, N, N]
    weights:  [num_support, input_dim, output_dim]
    compute_dtype: optional MXU-input dtype for supports / x / W / pre_sup
                   (e.g. jnp.bfloat16); accumulation stays float32.
    returns:  [N, output_dim] in x.dtype
    """
    num_support, n, _ = supports.shape
    _, input_dim, output_dim = weights.shape
    assert x.shape == (n, input_dim)
    assert supports.shape == (num_support, n, n)

    budget, node_target, k_target = _budgets()
    out_dtype = x.dtype
    mxu_dtype = jnp.dtype(jnp.float32 if compute_dtype is None else compute_dtype)
    itm = mxu_dtype.itemsize
    out_itm = jnp.dtype(out_dtype).itemsize

    tile, n_p = _choose_node_tile(n, node_target)
    fin_p = _round_up(input_dim, 128)
    fout_p = _round_up(output_dim, 128)

    # Exactly one cast + one pad pass per operand (zero when already padded
    # and in the right dtype).  supports is the dominant bytes term.
    # TODO(synk): for multi-layer models, prepare & cache sup_p outside this
    # function so the S x N x N supports are not re-padded every forward.
    sup_p = _prep(supports, n_p, n_p, mxu_dtype)
    x_p = _prep(x, n_p, fin_p, mxu_dtype)
    w_p = _prep(weights, fin_p, fout_p, mxu_dtype)

    use_fused = output_dim > input_dim
    fused_vmem = 0
    if use_fused:
        # Fused path keeps a full (fin_p, fout_p) W block and (tile, fout_p)
        # output block resident; only take it when the double-buffered working
        # set fits this generation's VMEM, else fall back to the tiled
        # pre_sup path (which always fits).
        # TODO(synk): tile fout_p inside the fused kernel instead of falling back.
        fused_vmem = (2 * tile * tile * itm        # support block
                      + 2 * tile * fin_p * itm     # x block
                      + 2 * fin_p * fout_p * itm   # W block
                      + 2 * tile * fout_p * out_itm
                      + 4 * tile * fin_p           # sx scratch (f32)
                      + 4 * tile * fout_p)         # out accumulator (f32)
        use_fused = fused_vmem + 8 * 1024 * 1024 <= budget

    if use_fused:
        out_p = _fused(sup_p, x_p, w_p, out_dtype, tile=tile,
                       vmem_limit=_vmem_limit(fused_vmem, budget))
    else:
        tile_k = _choose_k_tile(fin_p, fout_p, itm, k_target, budget)
        pre_vmem = (2 * tile * tile_k * itm
                    + 2 * tile_k * fout_p * itm
                    + 2 * tile * fout_p * itm
                    + 4 * tile * fout_p)
        agg_vmem = (2 * tile * tile * itm
                    + 2 * tile * fout_p * itm
                    + 2 * tile * fout_p * out_itm
                    + 4 * tile * fout_p)
        pre = _compute_presup(x_p, w_p, mxu_dtype, tile_n=tile, tile_k=tile_k,
                              vmem_limit=_vmem_limit(pre_vmem, budget))
        out_p = _aggregate(sup_p, pre, out_dtype, tile=tile,
                           vmem_limit=_vmem_limit(agg_vmem, budget))

    if n_p == n and fout_p == output_dim:
        return out_p
    return out_p[:n, :output_dim]


def _reference(x, supports, weights):
    out = None
    for i in range(supports.shape[0]):
        pre_sup = x @ weights[i]
        term = supports[i] @ pre_sup
        out = term if out is None else out + term
    return jnp.maximum(out, 0.0)


if __name__ == "__main__":
    key = jax.random.PRNGKey(0)
    k_x, k_s, k_w, k_x2, k_s2, k_w2 = jax.random.split(key, 6)

    # Case 1: output_dim > input_dim  -> fused (support @ x) @ W path.
    num_support, n, fin, fout = 2, 64, 32, 64
    x = jax.random.normal(k_x, (n, fin), dtype=jnp.float32)
    supports = jax.random.normal(k_s, (num_support, n, n), dtype=jnp.float32)
    weights = jax.random.normal(k_w, (num_support, fin, fout), dtype=jnp.float32)

    out = jax.block_until_ready(graph_convolution(x, supports, weights))
    ref = _reference(x, supports, weights)
    assert out.shape == (n, fout)
    assert jnp.allclose(out, ref, atol=5e-3, rtol=2e-3), "fused path mismatch"

    # Case 2: output_dim < input_dim (non-128-aligned dims) -> pre_sup path.
    n2, fin2, fout2 = 96, 80, 16
    x2 = jax.random.normal(k_x2, (n2, fin2), dtype=jnp.float32)
    supports2 = jax.random.normal(k_s2, (num_support, n2, n2), dtype=jnp.float32)
    weights2 = jax.random.normal(k_w2, (num_support, fin2, fout2),
                                 dtype=jnp.float32)
    out2 = jax.block_until_ready(graph_convolution(x2, supports2, weights2))
    ref2 = _reference(x2, supports2, weights2)
    assert out2.shape == (n2, fout2)
    assert jnp.allclose(out2, ref2, atol=5e-3, rtol=2e-3), "pre_sup path mismatch"

    # Case 3: bf16 MXU inputs (supports, x, W all bf16; f32 accumulation).
    out_bf16 = jax.block_until_ready(
        graph_convolution(x, supports, weights, compute_dtype=jnp.bfloat16))
    rel_err = jnp.max(jnp.abs(out_bf16 - ref)) / (jnp.max(jnp.abs(ref)) + 1e-6)
    assert rel_err < 0.05, f"bf16 path mismatch (rel_err={rel_err})"

    print("KERNEL_OK")
</pallas_src>

<mosaic_0001>
module attributes {stable_mosaic.version = 11 : i64} {
  func.func @_fused_kernel(%arg0: i32, %arg1: i32, %arg2: i32, %arg3: memref<1x128x128xf32, #tpu.memory_space<vmem>>, %arg4: memref<128x128xf32, #tpu.memory_space<vmem>>, %arg5: memref<1x128x128xf32, #tpu.memory_space<vmem>>, %arg6: memref<128x128xf32, #tpu.memory_space<vmem>>, %arg7: memref<128x128xf32, #tpu.memory_space<vmem>>, %arg8: memref<128x128xf32, #tpu.memory_space<vmem>>) attributes {dimension_semantics = [#tpu.dimension_semantics<parallel>, #tpu.dimension_semantics<arbitrary>, #tpu.dimension_semantics<arbitrary>], iteration_bounds = array<i64: 1, 2, 1>, scalar_prefetch = 0 : i64, scratch_operands = 2 : i64, tpu.core_type = #tpu.core_type<tc>, window_params = [{transform_indices = @transform_0, window_bounds = array<i64: 1, 128, 128>}, {transform_indices = @transform_1, window_bounds = array<i64: 128, 128>}, {transform_indices = @transform_2, window_bounds = array<i64: 1, 128, 128>}, {transform_indices = @transform_3, window_bounds = array<i64: 128, 128>}]} {
    %c0_i32 = arith.constant 0 : i32
    %0 = arith.cmpi eq, %arg1, %c0_i32 : i32
    %c0_i32_0 = arith.constant 0 : i32
    %1 = arith.cmpi eq, %arg2, %c0_i32_0 : i32
    %2 = arith.andi %0, %1 : i1
    %3 = arith.extui %2 : i1 to i32
    %c0_i32_1 = arith.constant 0 : i32
    %4 = arith.cmpi ne, %3, %c0_i32_1 : i32
    scf.if %4 {
      %cst_16 = arith.constant 0.000000e+00 : f32
      %23 = vector.broadcast %cst_16 : f32 to vector<128x128xf32>
      %c0_17 = arith.constant 0 : index
      %c0_18 = arith.constant 0 : index
      %24 = vector.load %arg8[%c0_17, %c0_18] : memref<128x128xf32, #tpu.memory_space<vmem>>, vector<128x128xf32>
      tpu.vector_store %arg8[%c0_17, %c0_18], %23 {strides = array<i32>} : memref<128x128xf32, #tpu.memory_space<vmem>>, vector<128x128xf32>,
    } else {
    }
    %c0_i32_2 = arith.constant 0 : i32
    %5 = arith.cmpi eq, %arg2, %c0_i32_2 : i32
    %6 = arith.extui %5 : i1 to i32
    %c0_i32_3 = arith.constant 0 : i32
    %7 = arith.cmpi ne, %6, %c0_i32_3 : i32
    scf.if %7 {
      %cst_16 = arith.constant 0.000000e+00 : f32
      %23 = vector.broadcast %cst_16 : f32 to vector<128x128xf32>
      %c0_17 = arith.constant 0 : index
      %c0_18 = arith.constant 0 : index
      %24 = vector.load %arg7[%c0_17, %c0_18] : memref<128x128xf32, #tpu.memory_space<vmem>>, vector<128x128xf32>
      tpu.vector_store %arg7[%c0_17, %c0_18], %23 {strides = array<i32>} : memref<128x128xf32, #tpu.memory_space<vmem>>, vector<128x128xf32>,
    } else {
    }
    %c0 = arith.constant 0 : index
    %c0_4 = arith.constant 0 : index
    %8 = vector.load %arg7[%c0, %c0_4] : memref<128x128xf32, #tpu.memory_space<vmem>>, vector<128x128xf32>
    %c0_5 = arith.constant 0 : index
    %c0_6 = arith.constant 0 : index
    %c0_7 = arith.constant 0 : index
    %9 = vector.load %arg3[%c0_5, %c0_6, %c0_7] : memref<1x128x128xf32, #tpu.memory_space<vmem>>, vector<1x128x128xf32>
    %10 = vector.shape_cast %9 : vector<1x128x128xf32> to vector<128x128xf32>
    %c0_8 = arith.constant 0 : index
    %c0_9 = arith.constant 0 : index
    %11 = vector.load %arg4[%c0_8, %c0_9] : memref<128x128xf32, #tpu.memory_space<vmem>>, vector<128x128xf32>
    %cst = arith.constant dense<0.000000e+00> : vector<128x128xf32>
    %12 = tpu.matmul %10, %11, %cst {dimension_numbers = #tpu.dot_dimension_numbers<[1], [0], [0], [1], [0, 0, 1, 1], [], []>} : vector<128x128xf32>, vector<128x128xf32>, vector<128x128xf32> -> vector<128x128xf32>
    %13 = arith.addf %8, %12 : vector<128x128xf32>
    %c0_10 = arith.constant 0 : index
    %c0_11 = arith.constant 0 : index
    %14 = vector.load %arg7[%c0_10, %c0_11] : memref<128x128xf32, #tpu.memory_space<vmem>>, vector<128x128xf32>
    tpu.vector_store %arg7[%c0_10, %c0_11], %13 {strides = array<i32>} : memref<128x128xf32, #tpu.memory_space<vmem>>, vector<128x128xf32>,
    %c0_i32_12 = arith.constant 0 : i32
    %15 = arith.cmpi eq, %arg2, %c0_i32_12 : i32
    %16 = arith.extui %15 : i1 to i32
    %c0_i32_13 = arith.constant 0 : i32
    %17 = arith.cmpi ne, %16, %c0_i32_13 : i32
    scf.if %17 {
      %c0_16 = arith.constant 0 : index
      %c0_17 = arith.constant 0 : index
      %23 = vector.load %arg8[%c0_16, %c0_17] : memref<128x128xf32, #tpu.memory_space<vmem>>, vector<128x128xf32>
      %c0_18 = arith.constant 0 : index
      %c0_19 = arith.constant 0 : index
      %24 = vector.load %arg7[%c0_18, %c0_19] : memref<128x128xf32, #tpu.memory_space<vmem>>, vector<128x128xf32>
      %c0_20 = arith.constant 0 : index
      %c0_21 = arith.constant 0 : index
      %c0_22 = arith.constant 0 : index
      %25 = vector.load %arg5[%c0_20, %c0_21, %c0_22] : memref<1x128x128xf32, #tpu.memory_space<vmem>>, vector<1x128x128xf32>
      %26 = vector.shape_cast %25 : vector<1x128x128xf32> to vector<128x128xf32>
      %cst_23 = arith.constant dense<0.000000e+00> : vector<128x128xf32>
      %27 = tpu.matmul %24, %26, %cst_23 {dimension_numbers = #tpu.dot_dimension_numbers<[1], [0], [0], [1], [0, 0, 1, 1], [], []>} : vector<128x128xf32>, vector<128x128xf32>, vector<128x128xf32> -> vector<128x128xf32>
      %28 = arith.addf %23, %27 : vector<128x128xf32>
      %c0_24 = arith.constant 0 : index
      %c0_25 = arith.constant 0 : index
      %29 = vector.load %arg8[%c0_24, %c0_25] : memref<128x128xf32, #tpu.memory_space<vmem>>, vector<128x128xf32>
      tpu.vector_store %arg8[%c0_24, %c0_25], %28 {strides = array<i32>} : memref<128x128xf32, #tpu.memory_space<vmem>>, vector<128x128xf32>,
    } else {
    }
    %c1_i32 = arith.constant 1 : i32
    %18 = arith.cmpi eq, %arg1, %c1_i32 : i32
    %c0_i32_14 = arith.constant 0 : i32
    %19 = arith.cmpi eq, %arg2, %c0_i32_14 : i32
    %20 = arith.andi %18, %19 : i1
    %21 = arith.extui %20 : i1 to i32
    %c0_i32_15 = arith.constant 0 : i32
    %22 = arith.cmpi ne, %21, %c0_i32_15 : i32
    scf.if %22 {
      %c0_16 = arith.constant 0 : index
      %c0_17 = arith.constant 0 : index
      %23 = vector.load %arg8[%c0_16, %c0_17] : memref<128x128xf32, #tpu.memory_space<vmem>>, vector<128x128xf32>
      %cst_18 = arith.constant 0.000000e+00 : f32
      %24 = vector.broadcast %cst_18 : f32 to vector<128x128xf32>
      %25 = arith.maximumf %23, %24 : vector<128x128xf32>
      %c0_19 = arith.constant 0 : index
      %c0_20 = arith.constant 0 : index
      %26 = vector.load %arg6[%c0_19, %c0_20] : memref<128x128xf32, #tpu.memory_space<vmem>>, vector<128x128xf32>
      tpu.vector_store %arg6[%c0_19, %c0_20], %25 {strides = array<i32>} : memref<128x128xf32, #tpu.memory_space<vmem>>, vector<128x128xf32>,
    } else {
    }
    return
  }
  func.func @transform_0(%arg0: i32, %arg1: i32, %arg2: i32) -> (i32, i32, i32) {
    %c0_i32 = arith.constant 0 : i32
    return %arg1, %arg0, %arg2 : i32, i32, i32
  }
  func.func @transform_1(%arg0: i32, %arg1: i32, %arg2: i32) -> (i32, i32) {
    %c0_i32 = arith.constant 0 : i32
    %c0_i32_0 = arith.constant 0 : i32
    return %arg2, %c0_i32 : i32, i32
  }
  func.func @transform_2(%arg0: i32, %arg1: i32, %arg2: i32) -> (i32, i32, i32) {
    %c0_i32 = arith.constant 0 : i32
    %c0_i32_0 = arith.constant 0 : i32
    %c0_i32_1 = arith.constant 0 : i32
    return %arg1, %c0_i32, %c0_i32_0 : i32, i32, i32
  }
  func.func @transform_3(%arg0: i32, %arg1: i32, %arg2: i32) -> (i32, i32) {
    %c0_i32 = arith.constant 0 : i32
    %c0_i32_0 = arith.constant 0 : i32
    return %arg0, %c0_i32 : i32, i32
  }
}

</mosaic_0001>

<llo_original>
// kernel: tpu_custom_call.1
$region0: #{tpu_custom_call.1}
  #allocation0 [shape = 'u32[]', space=smem, size = 0x4, offset = 0x4, fixed_abs, tag = 'smem constant byte address 0x4 - core index']
  #allocation1 [shape = 'u32[72,128]{1,0:T(1,128)}', space=vmem, size = 0x9000, scoped, tag = 'internal scratch']
  #allocation2 [shape = 'f32[128,128]{1,0:T(8,128)}', space=vmem, size = 0x10000, scoped, tag = 'scratch operand']
  #allocation3 [shape = 'f32[128,128]{1,0:T(8,128)}', space=vmem, size = 0x10000, scoped, tag = 'scratch operand']
  %s0 = inlined_call_operand.hbm [shape: f32[2,128,128], index: 0, kind: input, shape index: {}]
  %s1 = inlined_call_operand.hbm [shape: f32[128,128], index: 1, kind: input, shape index: {}]
  %s2 = inlined_call_operand.hbm [shape: f32[2,128,128], index: 2, kind: input, shape index: {}]
  %s3 = inlined_call_operand.hbm [shape: f32[128,128], index: 3, kind: output, shape index: {}]
  %s4 = sld [smem:[#allocation0]]
  $region73: #{tpu_custom_call.1} parent=0
    _
  %s6 = ssub.s32 1, %s4
  %s7 = scalar_select 0, %s6, %s4
  $region1: #{tpu_custom_call.1} parent=0
    #allocation4 [shape = 'u8[131072]{0}', space=vmem, size = 0x20000, scoped, tag = 'input window, operand 0']
    #allocation5 [shape = 's32[2]{0}', space=sflag, size = 0x8, scoped, tag = 'scoped memory for tpu_custom_call.1']
    #allocation6 [shape = 's32[2]{0}', space=sflag, size = 0x8, scoped, tag = 'scoped memory for tpu_custom_call.1']
    #allocation7 [shape = 'u8[65536]{0}', space=vmem, size = 0x10000, scoped, tag = 'input window, operand 1, single buffered']
    #allocation8 [shape = 's32[1]{0}', space=sflag, size = 0x4, scoped, tag = 'scoped memory for tpu_custom_call.1']
    #allocation9 [shape = 'u8[131072]{0}', space=vmem, size = 0x20000, scoped, tag = 'input window, operand 2']
    #allocation10 [shape = 'u8[65536]{0}', space=vmem, size = 0x10000, scoped, tag = 'output window, operand 0, single buffered']
    %8 = vsyncpa [#allocation5], 0
    %s9 = scalar_lea.sflag [#allocation5], 1
    %10 = vsyncpa %s9, 0
    %11 = vsyncpa [#allocation8], 0
    %12 = vsyncpa [#allocation6], 0
    loop: start=0, step=1, limit=4
    $region2: #{tpu_custom_call.1} parent=1 // loop_pre_header
      _
    $region3: #{tpu_custom_call.1} parent=1 // loop_header
      %s14 = sphi 0, %s18
      %p15 = scmp.ge.s32.totalorder %s14, 4
      %s21 = sphi 0, %s40
      %s22 = sphi 0, %s36
      %s23 = sphi 0, %s32
      %s24 = sphi 0, %s21
      %s25 = sphi 0, %s22
      %s26 = sphi 0, %s23
      %s27 = sphi 0, %s24
      %s28 = sphi 0, %s25
      %s29 = sphi 0, %s26
      %s47 = sphi 0, %s49
      %s50 = sphi 0, %s47
      %s51 = sphi 0, %s50
      %s67 = sphi 0, %s51
      %s73 = sphi 0, %s75
      %s76 = sphi 0, %s73
      %s77 = sphi 0, %s76
      %s93 = sphi 0, %s77
      %s99 = sphi 0, %s101
      %s102 = sphi 0, %s99
      %s103 = sphi 0, %s102
      %s119 = sphi 0, %s103
      %s125 = sphi 0, %s127
      %s128 = sphi 0, %s125
      %s129 = sphi 0, %s128
      %s145 = sphi 0, %s129
    $region4: #{tpu_custom_call.1} parent=1 // loop_header_branch
      %17 = sbr.rel (%p15) target = $region8
    $region5: #{tpu_custom_call.1} parent=1 // loop_body
      %s19 = ssub.s32 %s14, 1
      %s20 = ssub.s32 %s14, 2
      %s30 = sadd.s32 1, %s23
      %p31 = scmp.ge.s32.totalorder %s30, 1
      %s32 = scalar_select %p31, 0, %s30
      %s33 = sadd.s32 1, %s22
      %s34 = scalar_select %p31, %s33, %s22
      %p35 = scmp.ge.s32.totalorder %s34, 2
      %s36 = scalar_select %p35, 0, %s34
      %s37 = sadd.s32 1, %s21
      %s38 = scalar_select %p35, %s37, %s21
      %p39 = scmp.ge.s32.totalorder %s38, 1
      %s40 = scalar_select %p39, 0, %s38
      %s41 = ssub.s32 %s22, %s36
      %s42 = ssub.s32 %s21, %s40
      %s43 = sor.u32 %s41, %s42
      %s44 = ssub.s32 %s23, %s32
      %s45 = sor.u32 %s43, %s44
      %p46 = scmp.eq.s32.totalorder %s45, 0
      %s48 = sadd.s32 %s47, 1
      %s49 = scalar_select %p46, %s47, %s48
      %p52 = pneg %p46
      %p53 = scmp.eq.s32.totalorder %s14, 1
      %p54 = por %p52, %p53
      %p55 = scmp.ne.s32.totalorder %s47, %s50
      %p56 = scmp.eq.s32.totalorder %s14, 0
      %p57 = por %p55, %p56
      %p58 = scmp.ne.s32.totalorder %s47, %s50
      %p59 = scmp.eq.s32.totalorder %s19, 1
      %p60 = por %p58, %p59
      %p61 = scmp.ne.s32.totalorder %s50, %s51
      %p62 = scmp.eq.s32.totalorder %s19, 0
      %p63 = por %p61, %p62
      %p64 = scmp.ne.s32.totalorder %s50, %s51
      %p65 = scmp.eq.s32.totalorder %s20, 1
      %p66 = por %p64, %p65
      %p68 = scmp.ne.s32.totalorder %s51, %s67
      %p69 = scmp.eq.s32.totalorder %s20, 0
      %p70 = por %p68, %p69
      %s71 = ssub.s32 %s23, %s32
      %p72 = scmp.eq.s32.totalorder %s71, 0
      %s74 = sadd.s32 %s73, 1
      %s75 = scalar_select %p72, %s73, %s74
      %p78 = pneg %p72
      %p79 = scmp.eq.s32.totalorder %s14, 1
      %p80 = por %p78, %p79
      %p81 = scmp.ne.s32.totalorder %s73, %s76
      %p82 = scmp.eq.s32.totalorder %s14, 0
      %p83 = por %p81, %p82
      %p84 = scmp.ne.s32.totalorder %s73, %s76
      %p85 = scmp.eq.s32.totalorder %s19, 1
      %p86 = por %p84, %p85
      %p87 = scmp.ne.s32.totalorder %s76, %s77
      %p88 = scmp.eq.s32.totalorder %s19, 0
      %p89 = por %p87, %p88
      %p90 = scmp.ne.s32.totalorder %s76, %s77
      %p91 = scmp.eq.s32.totalorder %s20, 1
      %p92 = por %p90, %p91
      %p94 = scmp.ne.s32.totalorder %s77, %s93
      %p95 = scmp.eq.s32.totalorder %s20, 0
      %p96 = por %p94, %p95
      %s97 = ssub.s32 %s22, %s36
      %p98 = scmp.eq.s32.totalorder %s97, 0
      %s100 = sadd.s32 %s99, 1
      %s101 = scalar_select %p98, %s99, %s100
      %p104 = pneg %p98
      %p105 = scmp.eq.s32.totalorder %s14, 1
      %p106 = por %p104, %p105
      %p107 = scmp.ne.s32.totalorder %s99, %s102
      %p108 = scmp.eq.s32.totalorder %s14, 0
      %p109 = por %p107, %p108
      %p110 = scmp.ne.s32.totalorder %s99, %s102
      %p111 = scmp.eq.s32.totalorder %s19, 1
      %p112 = por %p110, %p111
      %p113 = scmp.ne.s32.totalorder %s102, %s103
      %p114 = scmp.eq.s32.totalorder %s19, 0
      %p115 = por %p113, %p114
      %p116 = scmp.ne.s32.totalorder %s102, %s103
      %p117 = scmp.eq.s32.totalorder %s20, 1
      %p118 = por %p116, %p117
      %p120 = scmp.ne.s32.totalorder %s103, %s119
      %p121 = scmp.eq.s32.totalorder %s20, 0
      %p122 = por %p120, %p121
      %s123 = ssub.s32 %s21, %s40
      %p124 = scmp.eq.s32.totalorder %s123, 0
      %s126 = sadd.s32 %s125, 1
      %s127 = scalar_select %p124, %s125, %s126
      %p130 = pneg %p124
      %p131 = scmp.eq.s32.totalorder %s14, 1
      %p132 = por %p130, %p131
      %p133 = scmp.ne.s32.totalorder %s125, %s128
      %p134 = scmp.eq.s32.totalorder %s14, 0
      %p135 = por %p133, %p134
      %p136 = scmp.ne.s32.totalorder %s125, %s128
      %p137 = scmp.eq.s32.totalorder %s19, 1
      %p138 = por %p136, %p137
      %p139 = scmp.ne.s32.totalorder %s128, %s129
      %p140 = scmp.eq.s32.totalorder %s19, 0
      %p141 = por %p139, %p140
      %p142 = scmp.ne.s32.totalorder %s128, %s129
      %p143 = scmp.eq.s32.totalorder %s20, 1
      %p144 = por %p142, %p143
      %p146 = scmp.ne.s32.totalorder %s129, %s145
      %p147 = scmp.eq.s32.totalorder %s20, 0
      %p148 = por %p146, %p147
      %p149 = scmp.le.s32.totalorder 1, %s14
      %p150 = scmp.lt.s32.totalorder %s14, 3
      %p151 = pnand %p149, %p150
      %p152 = pneg %p151
      // Predicated region
      $region9: #{tpu_custom_call.1} parent=5 // pred_check
        _
      $region10: #{tpu_custom_call.1} parent=5 // pred_check_branch
        %154 = sbr.rel (%p151) target = $region12
      $region11: #{tpu_custom_call.1} parent=5 // pred_region
        %s155 = ssub.s32 %s14, 1
        // Predicated region
        $region13: #{tpu_custom_call.1} parent=11 // pred_check
          %p156 = pneg %p89
        $region14: #{tpu_custom_call.1} parent=11 // pred_check_branch
          %158 = sbr.rel (%p156) target = $region16
        $region15: #{tpu_custom_call.1} parent=11 // pred_region
          %s159 = smul.u32 16, %s26
          %161 = vsyncadd [#allocation8], 0
          %s162 = smul.addr %s159, 8
          %s163 = scalar_lea.hbm %s1, %s162
          %s164 = sshll.u32 %s163, 4
          %s165 = int_to_ptr.hbm [resolvable:$true] %s164
          %s166 = sshll.u32 [#allocation7], 4
          %s167 = int_to_ptr.vmem [resolvable:$true] %s166
          %172 = dma.hbm_to_vmem [thread:$0]  %s165, 2048, %s167, [#allocation8], 128, 128, 8
        $region16: #{tpu_custom_call.1} parent=11 // pred_fallthru
          _
      $region12: #{tpu_custom_call.1} parent=5 // pred_fallthru
        _
      %p173 = scmp.lt.s32.totalorder %s14, 2
      // Predicated region
      $region17: #{tpu_custom_call.1} parent=5 // pred_check
        %p174 = pneg %p173
      $region18: #{tpu_custom_call.1} parent=5 // pred_check_branch
        %176 = sbr.rel (%p174) target = $region20
      $region19: #{tpu_custom_call.1} parent=5 // pred_region
        // Predicated region
        $region21: #{tpu_custom_call.1} parent=19 // pred_check
          %p177 = pneg %p57
        $region22: #{tpu_custom_call.1} parent=19 // pred_check_branch
          %179 = sbr.rel (%p177) target = $region24
        $region23: #{tpu_custom_call.1} parent=19 // pred_region
          %s180 = sand.u32 %s14, 1
          %s181 = scalar_lea.sflag [#allocation5], %s180
          %s182 = sand.u32 %s47, 1
          %s183 = smul.addr %s182, 128
          %s184 = scalar_lea.vmem [#allocation4], %s183
          %s185 = smul.u32 16, %s21
          %187 = vsyncadd %s181, 0
          %s188 = sadd.s32 %s23, %s185
          %s189 = smul.addr %s22, 16
          %s190 = sadd.s32 %s188, %s189
          %s191 = smul.addr %s190, 8
          %s192 = scalar_lea.hbm %s0, %s191
          %s193 = sshll.u32 %s192, 4
          %s194 = int_to_ptr.hbm [resolvable:$true] %s193
          %s195 = sshll.u32 %s184, 4
          %s196 = int_to_ptr.vmem [resolvable:$true] %s195
          %201 = dma.hbm_to_vmem [thread:$0]  %s194, 2048, %s196, %s181, 128, 128, 8
        $region24: #{tpu_custom_call.1} parent=19 // pred_fallthru
          _
        // Predicated region
        $region25: #{tpu_custom_call.1} parent=19 // pred_check
          %p202 = pneg %p109
        $region26: #{tpu_custom_call.1} parent=19 // pred_check_branch
          %204 = sbr.rel (%p202) target = $region28
        $region27: #{tpu_custom_call.1} parent=19 // pred_region
          %s205 = sand.u32 %s14, 1
          %s206 = scalar_lea.sflag [#allocation5], %s205
          %s207 = sand.u32 %s99, 1
          %s208 = smul.addr %s207, 128
          %s209 = scalar_lea.vmem [#allocation9], %s208
          %211 = vsyncadd %s206, 0
          %s212 = smul.addr %s22, 16
          %s213 = smul.addr %s212, 8
          %s214 = scalar_lea.hbm %s2, %s213
          %s215 = sshll.u32 %s214, 4
          %s216 = int_to_ptr.hbm [resolvable:$true] %s215
          %s217 = sshll.u32 %s209, 4
          %s218 = int_to_ptr.vmem [resolvable:$true] %s217
          %223 = dma.hbm_to_vmem [thread:$0]  %s216, 2048, %s218, %s206, 128, 128, 8
        $region28: #{tpu_custom_call.1} parent=19 // pred_fallthru
          _
      $region20: #{tpu_custom_call.1} parent=5 // pred_fallthru
        _
      %p224 = scmp.le.s32.totalorder 1, %s14
      %p225 = scmp.lt.s32.totalorder %s14, 3
      %p226 = pnand %p224, %p225
      %p227 = pneg %p226
      // Predicated region
      $region29: #{tpu_custom_call.1} parent=5 // pred_check
        _
      $region30: #{tpu_custom_call.1} parent=5 // pred_check_branch
        %229 = sbr.rel (%p226) target = $region32
      $region31: #{tpu_custom_call.1} parent=5 // pred_region
        %s230 = ssub.s32 %s14, 1
        %s231 = sand.u32 %s19, 1
        %s232 = scalar_lea.sflag [#allocation5], %s231
        %s233 = sand.u32 %s50, 1
        %s234 = smul.addr %s233, 128
        %s235 = scalar_lea.vmem [#allocation4], %s234
        // Predicated region
        $region33: #{tpu_custom_call.1} parent=31 // pred_check
          %p236 = pneg %p63
        $region34: #{tpu_custom_call.1} parent=31 // pred_check_branch
          %238 = sbr.rel (%p236) target = $region36
        $region35: #{tpu_custom_call.1} parent=31 // pred_region
          %240 = dma.done %s232, 2048
        $region36: #{tpu_custom_call.1} parent=31 // pred_fallthru
          _
        // Predicated region
        $region37: #{tpu_custom_call.1} parent=31 // pred_check
          %p241 = pneg %p89
        $region38: #{tpu_custom_call.1} parent=31 // pred_check_branch
          %243 = sbr.rel (%p241) target = $region40
        $region39: #{tpu_custom_call.1} parent=31 // pred_region
          %245 = dma.done [#allocation8], 2048
        $region40: #{tpu_custom_call.1} parent=31 // pred_fallthru
          _
        %s246 = sand.u32 %s19, 1
        %s247 = scalar_lea.sflag [#allocation5], %s246
        %s248 = sand.u32 %s102, 1
        %s249 = smul.addr %s248, 128
        %s250 = scalar_lea.vmem [#allocation9], %s249
        // Predicated region
        $region41: #{tpu_custom_call.1} parent=31 // pred_check
          %p251 = pneg %p115
        $region42: #{tpu_custom_call.1} parent=31 // pred_check_branch
          %253 = sbr.rel (%p251) target = $region44
        $region43: #{tpu_custom_call.1} parent=31 // pred_region
          %255 = dma.done %s247, 2048
        $region44: #{tpu_custom_call.1} parent=31 // pred_fallthru
          _
        %s256 = sand.u32 %s19, 1
        %s257 = scalar_lea.sflag [#allocation5], %s256
        %s258 = sand.u32 %s50, 1
        %s259 = smul.addr %s258, 128
        %s260 = scalar_lea.vmem [#allocation4], %s259
        %p261 = pneg %p63
        %p262 = pneg %p60
        %p263 = pneg %p89
        %p264 = pneg %p86
        %s265 = sand.u32 %s19, 1
        %s266 = scalar_lea.sflag [#allocation5], %s265
        %s267 = sand.u32 %s102, 1
        %s268 = smul.addr %s267, 128
        %s269 = scalar_lea.vmem [#allocation9], %s268
        %p270 = pneg %p115
        %p271 = pneg %p112
        %p272 = pneg %p141
        %p273 = pneg %p138
        %s274 = smul.u32 16, %s24
        %s275 = smul.u32 16, %s26
        %s276 = smul.u32 16, %s24
        %p277 = scmp.eq.s32.totalorder %s25, 0
        %p278 = scmp.eq.s32.totalorder %s26, 0
        %p279 = pnand %p277, %p278
        %p280 = pneg %p279
        // Predicated region
        $region45: #{tpu_custom_call.1} parent=31 // pred_check
          _
        $region46: #{tpu_custom_call.1} parent=31 // pred_check_branch
          %282 = sbr.rel (%p279) target = $region48
        $region47: #{tpu_custom_call.1} parent=31 // pred_region
          %283 = vst [vmem:[#allocation3] sm:$0xff] 0.0
          %284 = vst [vmem:[#allocation3 + $0x8] sm:$0xff] 0.0
          %285 = vst [vmem:[#allocation3 + $0x10] sm:$0xff] 0.0
          %286 = vst [vmem:[#allocation3 + $0x18] sm:$0xff] 0.0
          %287 = vst [vmem:[#allocation3 + $0x20] sm:$0xff] 0.0
          %288 = vst [vmem:[#allocation3 + $0x28] sm:$0xff] 0.0
          %289 = vst [vmem:[#allocation3 + $0x30] sm:$0xff] 0.0
          %290 = vst [vmem:[#allocation3 + $0x38] sm:$0xff] 0.0
          %291 = vst [vmem:[#allocation3 + $0x40] sm:$0xff] 0.0
          %292 = vst [vmem:[#allocation3 + $0x48] sm:$0xff] 0.0
          %293 = vst [vmem:[#allocation3 + $0x50] sm:$0xff] 0.0
          %294 = vst [vmem:[#allocation3 + $0x58] sm:$0xff] 0.0
          %295 = vst [vmem:[#allocation3 + $0x60] sm:$0xff] 0.0
          %296 = vst [vmem:[#allocation3 + $0x68] sm:$0xff] 0.0
          %297 = vst [vmem:[#allocation3 + $0x70] sm:$0xff] 0.0
          %298 = vst [vmem:[#allocation3 + $0x78] sm:$0xff] 0.0
        $region48: #{tpu_custom_call.1} parent=31 // pred_fallthru
          _
        // Predicated region
        $region49: #{tpu_custom_call.1} parent=31 // pred_check
          %p299 = pneg %p278
        $region50: #{tpu_custom_call.1} parent=31 // pred_check_branch
          %301 = sbr.rel (%p299) target = $region52
        $region51: #{tpu_custom_call.1} parent=31 // pred_region
          %302 = vst [vmem:[#allocation2] sm:$0xff] 0.0
          %303 = vst [vmem:[#allocation2 + $0x8] sm:$0xff] 0.0
          %304 = vst [vmem:[#allocation2 + $0x10] sm:$0xff] 0.0
          %305 = vst [vmem:[#allocation2 + $0x18] sm:$0xff] 0.0
          %306 = vst [vmem:[#allocation2 + $0x20] sm:$0xff] 0.0
          %307 = vst [vmem:[#allocation2 + $0x28] sm:$0xff] 0.0
          %308 = vst [vmem:[#allocation2 + $0x30] sm:$0xff] 0.0
          %309 = vst [vmem:[#allocation2 + $0x38] sm:$0xff] 0.0
          %310 = vst [vmem:[#allocation2 + $0x40] sm:$0xff] 0.0
          %311 = vst [vmem:[#allocation2 + $0x48] sm:$0xff] 0.0
          %312 = vst [vmem:[#allocation2 + $0x50] sm:$0xff] 0.0
          %313 = vst [vmem:[#allocation2 + $0x58] sm:$0xff] 0.0
          %314 = vst [vmem:[#allocation2 + $0x60] sm:$0xff] 0.0
          %315 = vst [vmem:[#allocation2 + $0x68] sm:$0xff] 0.0
          %316 = vst [vmem:[#allocation2 + $0x70] sm:$0xff] 0.0
          %317 = vst [vmem:[#allocation2 + $0x78] sm:$0xff] 0.0
        $region52: #{tpu_custom_call.1} parent=31 // pred_fallthru
          _
        %v318 = vld [vmem:[#allocation2] sm:$0xff]
        %v319 = vld [vmem:[#allocation2 + $0x8] sm:$0xff]
        %v320 = vld [vmem:[#allocation2 + $0x10] sm:$0xff]
        %v321 = vld [vmem:[#allocation2 + $0x18] sm:$0xff]
        %v322 = vld [vmem:[#allocation2 + $0x20] sm:$0xff]
        %v323 = vld [vmem:[#allocation2 + $0x28] sm:$0xff]
        %v324 = vld [vmem:[#allocation2 + $0x30] sm:$0xff]
        %v325 = vld [vmem:[#allocation2 + $0x38] sm:$0xff]
        %v326 = vld [vmem:[#allocation2 + $0x40] sm:$0xff]
        %v327 = vld [vmem:[#allocation2 + $0x48] sm:$0xff]
        %v328 = vld [vmem:[#allocation2 + $0x50] sm:$0xff]
        %v329 = vld [vmem:[#allocation2 + $0x58] sm:$0xff]
        %v330 = vld [vmem:[#allocation2 + $0x60] sm:$0xff]
        %v331 = vld [vmem:[#allocation2 + $0x68] sm:$0xff]
        %v332 = vld [vmem:[#allocation2 + $0x70] sm:$0xff]
        %v333 = vld [vmem:[#allocation2 + $0x78] sm:$0xff]
        %v334 = vld [vmem:[%s235] sm:$0xff]
        %v335 = vld [vmem:[%s235 + $0x8] sm:$0xff]
        %v336 = vld [vmem:[%s235 + $0x10] sm:$0xff]
        %v337 = vld [vmem:[%s235 + $0x18] sm:$0xff]
        %v338 = vld [vmem:[%s235 + $0x20] sm:$0xff]
        %v339 = vld [vmem:[%s235 + $0x28] sm:$0xff]
        %v340 = vld [vmem:[%s235 + $0x30] sm:$0xff]
        %v341 = vld [vmem:[%s235 + $0x38] sm:$0xff]
        %v342 = vld [vmem:[%s235 + $0x40] sm:$0xff]
        %v343 = vld [vmem:[%s235 + $0x48] sm:$0xff]
        %v344 = vld [vmem:[%s235 + $0x50] sm:$0xff]
        %v345 = vld [vmem:[%s235 + $0x58] sm:$0xff]
        %v346 = vld [vmem:[%s235 + $0x60] sm:$0xff]
        %v347 = vld [vmem:[%s235 + $0x68] sm:$0xff]
        %v348 = vld [vmem:[%s235 + $0x70] sm:$0xff]
        %v349 = vld [vmem:[%s235 + $0x78] sm:$0xff]
        %v350 = vld [vmem:[#allocation7] sm:$0xff]
        %v351 = vld [vmem:[#allocation7 + $0x8] sm:$0xff]
        %v352 = vld [vmem:[#allocation7 + $0x10] sm:$0xff]
        %v353 = vld [vmem:[#allocation7 + $0x18] sm:$0xff]
        %v354 = vld [vmem:[#allocation7 + $0x20] sm:$0xff]
        %v355 = vld [vmem:[#allocation7 + $0x28] sm:$0xff]
        %v356 = vld [vmem:[#allocation7 + $0x30] sm:$0xff]
        %v357 = vld [vmem:[#allocation7 + $0x38] sm:$0xff]
        %v358 = vld [vmem:[#allocation7 + $0x40] sm:$0xff]
        %v359 = vld [vmem:[#allocation7 + $0x48] sm:$0xff]
        %v360 = vld [vmem:[#allocation7 + $0x50] sm:$0xff]
        %v361 = vld [vmem:[#allocation7 + $0x58] sm:$0xff]
        %v362 = vld [vmem:[#allocation7 + $0x60] sm:$0xff]
        %v363 = vld [vmem:[#allocation7 + $0x68] sm:$0xff]
        %v364 = vld [vmem:[#allocation7 + $0x70] sm:$0xff]
        %v365 = vld [vmem:[#allocation7 + $0x78] sm:$0xff]
        %366 = vmatpush.msra.mxu0 %v365
        %367 = vmatpush.msra.mxu0 %v364
        %368 = vmatpush.msra.mxu0 %v363
        %369 = vmatpush.msra.mxu0 %v362
        %370 = vmatpush.msra.mxu0 %v361
        %371 = vmatpush.msra.mxu0 %v360
        %372 = vmatpush.msra.mxu0 %v359
        %373 = vmatpush.msra.mxu0 %v358
        %374 = vmatpush.msra.mxu0 %v357
        %375 = vmatpush.msra.mxu0 %v356
        %376 = vmatpush.msra.mxu0 %v355
        %377 = vmatpush.msra.mxu0 %v354
        %378 = vmatpush.msra.mxu0 %v353
        %379 = vmatpush.msra.mxu0 %v352
        %380 = vmatpush.msra.mxu0 %v351
        %381 = vmatpush.msra.mxu0 %v350
        %382 = vmatmul.f32.gmra.mxu0 %v334
        %v383 = vpop.f32.mrf.mxu0
        %v384 = vadd.f32 0.0, %v383
        %385 = vmatmul.f32.gmra.mxu0 %v335
        %v386 = vpop.f32.mrf.mxu0
        %v387 = vadd.f32 0.0, %v386
        %388 = vmatmul.f32.gmra.mxu0 %v336
        %v389 = vpop.f32.mrf.mxu0
        %v390 = vadd.f32 0.0, %v389
        %391 = vmatmul.f32.gmra.mxu0 %v337
        %v392 = vpop.f32.mrf.mxu0
        %v393 = vadd.f32 0.0, %v392
        %394 = vmatmul.f32.gmra.mxu0 %v338
        %v395 = vpop.f32.mrf.mxu0
        %v396 = vadd.f32 0.0, %v395
        %397 = vmatmul.f32.gmra.mxu0 %v339
        %v398 = vpop.f32.mrf.mxu0
        %v399 = vadd.f32 0.0, %v398
        %400 = vmatmul.f32.gmra.mxu0 %v340
        %v401 = vpop.f32.mrf.mxu0
        %v402 = vadd.f32 0.0, %v401
        %403 = vmatmul.f32.gmra.mxu0 %v341
        %v404 = vpop.f32.mrf.mxu0
        %v405 = vadd.f32 0.0, %v404
        %406 = vmatmul.f32.gmra.mxu0 %v342
        %v407 = vpop.f32.mrf.mxu0
        %v408 = vadd.f32 0.0, %v407
        %409 = vmatmul.f32.gmra.mxu0 %v343
        %v410 = vpop.f32.mrf.mxu0
        %v411 = vadd.f32 0.0, %v410
        %412 = vmatmul.f32.gmra.mxu0 %v344
        %v413 = vpop.f32.mrf.mxu0
        %v414 = vadd.f32 0.0, %v413
        %415 = vmatmul.f32.gmra.mxu0 %v345
        %v416 = vpop.f32.mrf.mxu0
        %v417 = vadd.f32 0.0, %v416
        %418 = vmatmul.f32.gmra.mxu0 %v346
        %v419 = vpop.f32.mrf.mxu0
        %v420 = vadd.f32 0.0, %v419
        %421 = vmatmul.f32.gmra.mxu0 %v347
        %v422 = vpop.f32.mrf.mxu0
        %v423 = vadd.f32 0.0, %v422
        %424 = vmatmul.f32.gmra.mxu0 %v348
        %v425 = vpop.f32.mrf.mxu0
        %v426 = vadd.f32 0.0, %v425
        %427 = vmatmul.f32.gmra.mxu0 %v349
        %v428 = vpop.f32.mrf.mxu0
        %v429 = vadd.f32 0.0, %v428
        %430 = vdwg.mxu0
        %v431 = vadd.f32 %v318, %v384
        %v432 = vadd.f32 %v319, %v387
        %v433 = vadd.f32 %v320, %v390
        %v434 = vadd.f32 %v321, %v393
        %v435 = vadd.f32 %v322, %v396
        %v436 = vadd.f32 %v323, %v399
        %v437 = vadd.f32 %v324, %v402
        %v438 = vadd.f32 %v325, %v405
        %v439 = vadd.f32 %v326, %v408
        %v440 = vadd.f32 %v327, %v411
        %v441 = vadd.f32 %v328, %v414
        %v442 = vadd.f32 %v329, %v417
        %v443 = vadd.f32 %v330, %v420
        %v444 = vadd.f32 %v331, %v423
        %v445 = vadd.f32 %v332, %v426
        %v446 = vadd.f32 %v333, %v429
        %447 = vst [vmem:[#allocation2] sm:$0xff] %v431
        %448 = vst [vmem:[#allocation2 + $0x8] sm:$0xff] %v432
        %449 = vst [vmem:[#allocation2 + $0x10] sm:$0xff] %v433
        %450 = vst [vmem:[#allocation2 + $0x18] sm:$0xff] %v434
        %451 = vst [vmem:[#allocation2 + $0x20] sm:$0xff] %v435
        %452 = vst [vmem:[#allocation2 + $0x28] sm:$0xff] %v436
        %453 = vst [vmem:[#allocation2 + $0x30] sm:$0xff] %v437
        %454 = vst [vmem:[#allocation2 + $0x38] sm:$0xff] %v438
        %455 = vst [vmem:[#allocation2 + $0x40] sm:$0xff] %v439
        %456 = vst [vmem:[#allocation2 + $0x48] sm:$0xff] %v440
        %457 = vst [vmem:[#allocation2 + $0x50] sm:$0xff] %v441
        %458 = vst [vmem:[#allocation2 + $0x58] sm:$0xff] %v442
        %459 = vst [vmem:[#allocation2 + $0x60] sm:$0xff] %v443
        %460 = vst [vmem:[#allocation2 + $0x68] sm:$0xff] %v444
        %461 = vst [vmem:[#allocation2 + $0x70] sm:$0xff] %v445
        %462 = vst [vmem:[#allocation2 + $0x78] sm:$0xff] %v446
        // Predicated region
        $region53: #{tpu_custom_call.1} parent=31 // pred_check
          %p463 = pneg %p278
        $region54: #{tpu_custom_call.1} parent=31 // pred_check_branch
          %465 = sbr.rel (%p463) target = $region56
        $region55: #{tpu_custom_call.1} parent=31 // pred_region
          %v466 = vld [vmem:[#allocation3] sm:$0xff]
          %v467 = vld [vmem:[#allocation3 + $0x8] sm:$0xff]
          %v468 = vld [vmem:[#allocation3 + $0x10] sm:$0xff]
          %v469 = vld [vmem:[#allocation3 + $0x18] sm:$0xff]
          %v470 = vld [vmem:[#allocation3 + $0x20] sm:$0xff]
          %v471 = vld [vmem:[#allocation3 + $0x28] sm:$0xff]
          %v472 = vld [vmem:[#allocation3 + $0x30] sm:$0xff]
          %v473 = vld [vmem:[#allocation3 + $0x38] sm:$0xff]
          %v474 = vld [vmem:[#allocation3 + $0x40] sm:$0xff]
          %v475 = vld [vmem:[#allocation3 + $0x48] sm:$0xff]
          %v476 = vld [vmem:[#allocation3 + $0x50] sm:$0xff]
          %v477 = vld [vmem:[#allocation3 + $0x58] sm:$0xff]
          %v478 = vld [vmem:[#allocation3 + $0x60] sm:$0xff]
          %v479 = vld [vmem:[#allocation3 + $0x68] sm:$0xff]
          %v480 = vld [vmem:[#allocation3 + $0x70] sm:$0xff]
          %v481 = vld [vmem:[#allocation3 + $0x78] sm:$0xff]
          %v482 = vld [vmem:[#allocation2] sm:$0xff]
          %v483 = vld [vmem:[#allocation2 + $0x8] sm:$0xff]
          %v484 = vld [vmem:[#allocation2 + $0x10] sm:$0xff]
          %v485 = vld [vmem:[#allocation2 + $0x18] sm:$0xff]
          %v486 = vld [vmem:[#allocation2 + $0x20] sm:$0xff]
          %v487 = vld [vmem:[#allocation2 + $0x28] sm:$0xff]
          %v488 = vld [vmem:[#allocation2 + $0x30] sm:$0xff]
          %v489 = vld [vmem:[#allocation2 + $0x38] sm:$0xff]
          %v490 = vld [vmem:[#allocation2 + $0x40] sm:$0xff]
          %v491 = vld [vmem:[#allocation2 + $0x48] sm:$0xff]
          %v492 = vld [vmem:[#allocation2 + $0x50] sm:$0xff]
          %v493 = vld [vmem:[#allocation2 + $0x58] sm:$0xff]
          %v494 = vld [vmem:[#allocation2 + $0x60] sm:$0xff]
          %v495 = vld [vmem:[#allocation2 + $0x68] sm:$0xff]
          %v496 = vld [vmem:[#allocation2 + $0x70] sm:$0xff]
          %v497 = vld [vmem:[#allocation2 + $0x78] sm:$0xff]
          %v498 = vld [vmem:[%s250] sm:$0xff]
          %v499 = vld [vmem:[%s250 + $0x8] sm:$0xff]
          %v500 = vld [vmem:[%s250 + $0x10] sm:$0xff]
          %v501 = vld [vmem:[%s250 + $0x18] sm:$0xff]
          %v502 = vld [vmem:[%s250 + $0x20] sm:$0xff]
          %v503 = vld [vmem:[%s250 + $0x28] sm:$0xff]
          %v504 = vld [vmem:[%s250 + $0x30] sm:$0xff]
          %v505 = vld [vmem:[%s250 + $0x38] sm:$0xff]
          %v506 = vld [vmem:[%s250 + $0x40] sm:$0xff]
          %v507 = vld [vmem:[%s250 + $0x48] sm:$0xff]
          %v508 = vld [vmem:[%s250 + $0x50] sm:$0xff]
          %v509 = vld [vmem:[%s250 + $0x58] sm:$0xff]
          %v510 = vld [vmem:[%s250 + $0x60] sm:$0xff]
          %v511 = vld [vmem:[%s250 + $0x68] sm:$0xff]
          %v512 = vld [vmem:[%s250 + $0x70] sm:$0xff]
          %v513 = vld [vmem:[%s250 + $0x78] sm:$0xff]
          %514 = vmatpush.msra.mxu0 %v513
          %515 = vmatpush.msra.mxu0 %v512
          %516 = vmatpush.msra.mxu0 %v511
          %517 = vmatpush.msra.mxu0 %v510
          %518 = vmatpush.msra.mxu0 %v509
          %519 = vmatpush.msra.mxu0 %v508
          %520 = vmatpush.msra.mxu0 %v507
          %521 = vmatpush.msra.mxu0 %v506
          %522 = vmatpush.msra.mxu0 %v505
          %523 = vmatpush.msra.mxu0 %v504
          %524 = vmatpush.msra.mxu0 %v503
          %525 = vmatpush.msra.mxu0 %v502
          %526 = vmatpush.msra.mxu0 %v501
          %527 = vmatpush.msra.mxu0 %v500
          %528 = vmatpush.msra.mxu0 %v499
          %529 = vmatpush.msra.mxu0 %v498
          %530 = vmatmul.f32.gmra.mxu0 %v482
          %v531 = vpop.f32.mrf.mxu0
          %v532 = vadd.f32 0.0, %v531
          %533 = vmatmul.f32.gmra.mxu0 %v483
          %v534 = vpop.f32.mrf.mxu0
          %v535 = vadd.f32 0.0, %v534
          %536 = vmatmul.f32.gmra.mxu0 %v484
          %v537 = vpop.f32.mrf.mxu0
          %v538 = vadd.f32 0.0, %v537
          %539 = vmatmul.f32.gmra.mxu0 %v485
          %v540 = vpop.f32.mrf.mxu0
          %v541 = vadd.f32 0.0, %v540
          %542 = vmatmul.f32.gmra.mxu0 %v486
          %v543 = vpop.f32.mrf.mxu0
          %v544 = vadd.f32 0.0, %v543
          %545 = vmatmul.f32.gmra.mxu0 %v487
          %v546 = vpop.f32.mrf.mxu0
          %v547 = vadd.f32 0.0, %v546
          %548 = vmatmul.f32.gmra.mxu0 %v488
          %v549 = vpop.f32.mrf.mxu0
          %v550 = vadd.f32 0.0, %v549
          %551 = vmatmul.f32.gmra.mxu0 %v489
          %v552 = vpop.f32.mrf.mxu0
          %v553 = vadd.f32 0.0, %v552
          %554 = vmatmul.f32.gmra.mxu0 %v490
          %v555 = vpop.f32.mrf.mxu0
          %v556 = vadd.f32 0.0, %v555
          %557 = vmatmul.f32.gmra.mxu0 %v491
          %v558 = vpop.f32.mrf.mxu0
          %v559 = vadd.f32 0.0, %v558
          %560 = vmatmul.f32.gmra.mxu0 %v492
          %v561 = vpop.f32.mrf.mxu0
          %v562 = vadd.f32 0.0, %v561
          %563 = vmatmul.f32.gmra.mxu0 %v493
          %v564 = vpop.f32.mrf.mxu0
          %v565 = vadd.f32 0.0, %v564
          %566 = vmatmul.f32.gmra.mxu0 %v494
          %v567 = vpop.f32.mrf.mxu0
          %v568 = vadd.f32 0.0, %v567
          %569 = vmatmul.f32.gmra.mxu0 %v495
          %v570 = vpop.f32.mrf.mxu0
          %v571 = vadd.f32 0.0, %v570
          %572 = vmatmul.f32.gmra.mxu0 %v496
          %v573 = vpop.f32.mrf.mxu0
          %v574 = vadd.f32 0.0, %v573
          %575 = vmatmul.f32.gmra.mxu0 %v497
          %v576 = vpop.f32.mrf.mxu0
          %v577 = vadd.f32 0.0, %v576
          %578 = vdwg.mxu0
          %v579 = vadd.f32 %v466, %v532
          %v580 = vadd.f32 %v467, %v535
          %v581 = vadd.f32 %v468, %v538
          %v582 = vadd.f32 %v469, %v541
          %v583 = vadd.f32 %v470, %v544
          %v584 = vadd.f32 %v471, %v547
          %v585 = vadd.f32 %v472, %v550
          %v586 = vadd.f32 %v473, %v553
          %v587 = vadd.f32 %v474, %v556
          %v588 = vadd.f32 %v475, %v559
          %v589 = vadd.f32 %v476, %v562
          %v590 = vadd.f32 %v477, %v565
          %v591 = vadd.f32 %v478, %v568
          %v592 = vadd.f32 %v479, %v571
          %v593 = vadd.f32 %v480, %v574
          %v594 = vadd.f32 %v481, %v577
          %595 = vst [vmem:[#allocation3] sm:$0xff] %v579
          %596 = vst [vmem:[#allocation3 + $0x8] sm:$0xff] %v580
          %597 = vst [vmem:[#allocation3 + $0x10] sm:$0xff] %v581
          %598 = vst [vmem:[#allocation3 + $0x18] sm:$0xff] %v582
          %599 = vst [vmem:[#allocation3 + $0x20] sm:$0xff] %v583
          %600 = vst [vmem:[#allocation3 + $0x28] sm:$0xff] %v584
          %601 = vst [vmem:[#allocation3 + $0x30] sm:$0xff] %v585
          %602 = vst [vmem:[#allocation3 + $0x38] sm:$0xff] %v586
          %603 = vst [vmem:[#allocation3 + $0x40] sm:$0xff] %v587
          %604 = vst [vmem:[#allocation3 + $0x48] sm:$0xff] %v588
          %605 = vst [vmem:[#allocation3 + $0x50] sm:$0xff] %v589
          %606 = vst [vmem:[#allocation3 + $0x58] sm:$0xff] %v590
          %607 = vst [vmem:[#allocation3 + $0x60] sm:$0xff] %v591
          %608 = vst [vmem:[#allocation3 + $0x68] sm:$0xff] %v592
          %609 = vst [vmem:[#allocation3 + $0x70] sm:$0xff] %v593
          %610 = vst [vmem:[#allocation3 + $0x78] sm:$0xff] %v594
        $region56: #{tpu_custom_call.1} parent=31 // pred_fallthru
          _
        %p611 = scmp.eq.s32.totalorder %s25, 1
        %p612 = pnand %p611, %p278
        %p613 = pneg %p612
        // Predicated region
        $region57: #{tpu_custom_call.1} parent=31 // pred_check
          _
        $region58: #{tpu_custom_call.1} parent=31 // pred_check_branch
          %615 = sbr.rel (%p612) target = $region60
        $region59: #{tpu_custom_call.1} parent=31 // pred_region
          %v616 = vld [vmem:[#allocation3] sm:$0xff]
          %v617 = vld [vmem:[#allocation3 + $0x8] sm:$0xff]
          %v618 = vld [vmem:[#allocation3 + $0x10] sm:$0xff]
          %v619 = vld [vmem:[#allocation3 + $0x18] sm:$0xff]
          %v620 = vld [vmem:[#allocation3 + $0x20] sm:$0xff]
          %v621 = vld [vmem:[#allocation3 + $0x28] sm:$0xff]
          %v622 = vld [vmem:[#allocation3 + $0x30] sm:$0xff]
          %v623 = vld [vmem:[#allocation3 + $0x38] sm:$0xff]
          %v624 = vld [vmem:[#allocation3 + $0x40] sm:$0xff]
          %v625 = vld [vmem:[#allocation3 + $0x48] sm:$0xff]
          %v626 = vld [vmem:[#allocation3 + $0x50] sm:$0xff]
          %v627 = vld [vmem:[#allocation3 + $0x58] sm:$0xff]
          %v628 = vld [vmem:[#allocation3 + $0x60] sm:$0xff]
          %v629 = vld [vmem:[#allocation3 + $0x68] sm:$0xff]
          %v630 = vld [vmem:[#allocation3 + $0x70] sm:$0xff]
          %v631 = vld [vmem:[#allocation3 + $0x78] sm:$0xff]
          %v632 = vmax.f32 %v616, 0.0
          %v633 = vmax.f32 %v617, 0.0
          %v634 = vmax.f32 %v618, 0.0
          %v635 = vmax.f32 %v619, 0.0
          %v636 = vmax.f32 %v620, 0.0
          %v637 = vmax.f32 %v621, 0.0
          %v638 = vmax.f32 %v622, 0.0
          %v639 = vmax.f32 %v623, 0.0
          %v640 = vmax.f32 %v624, 0.0
          %v641 = vmax.f32 %v625, 0.0
          %v642 = vmax.f32 %v626, 0.0
          %v643 = vmax.f32 %v627, 0.0
          %v644 = vmax.f32 %v628, 0.0
          %v645 = vmax.f32 %v629, 0.0
          %v646 = vmax.f32 %v630, 0.0
          %v647 = vmax.f32 %v631, 0.0
          %648 = vst [vmem:[#allocation10] sm:$0xff] %v632
          %649 = vst [vmem:[#allocation10 + $0x8] sm:$0xff] %v633
          %650 = vst [vmem:[#allocation10 + $0x10] sm:$0xff] %v634
          %651 = vst [vmem:[#allocation10 + $0x18] sm:$0xff] %v635
          %652 = vst [vmem:[#allocation10 + $0x20] sm:$0xff] %v636
          %653 = vst [vmem:[#allocation10 + $0x28] sm:$0xff] %v637
          %654 = vst [vmem:[#allocation10 + $0x30] sm:$0xff] %v638
          %655 = vst [vmem:[#allocation10 + $0x38] sm:$0xff] %v639
          %656 = vst [vmem:[#allocation10 + $0x40] sm:$0xff] %v640
          %657 = vst [vmem:[#allocation10 + $0x48] sm:$0xff] %v641
          %658 = vst [vmem:[#allocation10 + $0x50] sm:$0xff] %v642
          %659 = vst [vmem:[#allocation10 + $0x58] sm:$0xff] %v643
          %660 = vst [vmem:[#allocation10 + $0x60] sm:$0xff] %v644
          %661 = vst [vmem:[#allocation10 + $0x68] sm:$0xff] %v645
          %662 = vst [vmem:[#allocation10 + $0x70] sm:$0xff] %v646
          %663 = vst [vmem:[#allocation10 + $0x78] sm:$0xff] %v647
        $region60: #{tpu_custom_call.1} parent=31 // pred_fallthru
          _
        // Predicated region
        $region61: #{tpu_custom_call.1} parent=31 // pred_check
          %p664 = pneg %p138
        $region62: #{tpu_custom_call.1} parent=31 // pred_check_branch
          %666 = sbr.rel (%p664) target = $region64
        $region63: #{tpu_custom_call.1} parent=31 // pred_region
          %s667 = smul.u32 16, %s24
          %669 = vsyncadd [#allocation6], 0
          %s670 = smul.addr %s667, 8
          %s671 = scalar_lea.hbm %s3, %s670
          %s672 = sshll.u32 [#allocation10], 4
          %s673 = int_to_ptr.vmem [resolvable:$true] %s672
          %s674 = sshll.u32 %s671, 4
          %s675 = int_to_ptr.hbm [resolvable:$true] %s674
          %680 = dma.vmem_to_hbm [thread:$0]  %s673, 2048, %s675, [#allocation6], 128, 128, 8
        $region64: #{tpu_custom_call.1} parent=31 // pred_fallthru
          _
        // Predicated region
        $region65: #{tpu_custom_call.1} parent=31 // pred_check
          %p681 = pneg %p138
        $region66: #{tpu_custom_call.1} parent=31 // pred_check_branch
          %683 = sbr.rel (%p681) target = $region68
        $region67: #{tpu_custom_call.1} parent=31 // pred_region
          %685 = dma.done [#allocation6], 2048
        $region68: #{tpu_custom_call.1} parent=31 // pred_fallthru
          _
      $region32: #{tpu_custom_call.1} parent=5 // pred_fallthru
        _
      %p686 = scmp.le.s32.totalorder 2, %s14
      // Predicated region
      $region69: #{tpu_custom_call.1} parent=5 // pred_check
        %p687 = pneg %p686
      $region70: #{tpu_custom_call.1} parent=5 // pred_check_branch
        %689 = sbr.rel (%p687) target = $region72
      $region71: #{tpu_custom_call.1} parent=5 // pred_region
        %s690 = ssub.s32 %s14, 2
      $region72: #{tpu_custom_call.1} parent=5 // pred_fallthru
        _
    $region6: #{tpu_custom_call.1} parent=1 // loop_footer
      %s18 = sadd.s32 1, %s14
    $region7: #{tpu_custom_call.1} parent=1 // loop_footer_branch
      %13 = sbr.rel target = $region3
    $region8: #{tpu_custom_call.1} parent=1 // loop_exit
      _
    %691 = vsyncpa [#allocation5], 1
    %s692 = scalar_lea.sflag [#allocation5], 1
    %693 = vsyncpa %s692, 1
    %694 = vsyncpa [#allocation8], 1
    %695 = vsyncpa [#allocation6], 1
    %s696 = scalar_lea.sflag [#allocation6], 1
    %697 = vsyncpa %s696, 1

</llo_original>
